<compile_context>
chip_gen: v5e
topology: v5e:2x2
jax: 0.10.0
libtpu: 0.0.40
codegen_flags: <defaults>
</compile_context>

<pallas_src>
import jax
import jax.numpy as jnp
from jax.experimental import pallas as pl
from jax.experimental.pallas import tpu as pltpu


# ----------------------------- Pallas kernel ------------------------------- #

def connectome_kernel(xT_ref, adjT_ref,
                      w1r_ref, w1o_ref, b1_ref,
                      w2r_ref, w2o_ref, b2_ref,
                      w3r_ref, w3o_ref, b3_ref,
                      alphas_ref, out_ref):
    """3 x (DenseGraphConv + PReLU) for all B graphs, channels-first layout."""
    # Hoisted once: scalar PReLU alphas from SMEM + all weight/bias loads.
    a1 = alphas_ref[0]
    a2 = alphas_ref[1]
    a3 = alphas_ref[2]
    w1r = w1r_ref[...]; w1o = w1o_ref[...]; b1 = b1_ref[...]
    w2r = w2r_ref[...]; w2o = w2o_ref[...]; b2 = b2_ref[...]
    w3r = w3r_ref[...]; w3o = w3o_ref[...]; b3 = b3_ref[...]

    def layer(adjT, hT, wr, wo, b, alpha):
        # DenseGraphConv(aggr='add'):  lin_rel(adj @ h) + lin_root(h)
        # channels-first:  agg^T = (adj @ h)^T = h^T @ adj^T
        #                  o^T   = W_rel @ agg^T + W_root @ h^T + b
        aggT = jnp.dot(hT, adjT, preferred_element_type=jnp.float32)       # (C, Np)
        o = (jnp.dot(wr, aggT, preferred_element_type=jnp.float32)
             + jnp.dot(wo, hT, preferred_element_type=jnp.float32)
             + b)                                                          # (H, Np)
        return jnp.where(o > 0, o, alpha * o)                              # PReLU

    num_graphs = xT_ref.shape[0]
    for g in range(num_graphs):            # static unroll; B is small & known
        adjT = adjT_ref[g]                 # (Np, Np)
        hT = xT_ref[g]                     # (C_in, Np)
        hT = layer(adjT, hT, w1r, w1o, b1, a1)
        hT = layer(adjT, hT, w2r, w2o, b2, a2)
        hT = layer(adjT, hT, w3r, w3o, b3, a3)
        out_ref[g] = hT                    # (H, Np) -- lane-dense, unmasked vst


# ------------------------------- wrapper ------------------------------------ #

def connectome_forward(x, adj, params):
    """x: (B, N, C_in), adj: (B, N, N) -> flattened features (B, N * H)."""
    B, N, C = x.shape
    H = params["w1_rel"].shape[0]
    N_pad = ((N + 127) // 128) * 128       # lane-dense node axis

    # Channels-first + zero node padding (zero rows/cols are inert for 'add'
    # aggregation; padded output columns are sliced off below).
    x_pad = jnp.pad(x, ((0, 0), (0, N_pad - N), (0, 0)))
    xT = jnp.transpose(x_pad, (0, 2, 1))                         # (B, C, Np)
    adj_pad = jnp.pad(adj, ((0, 0), (0, N_pad - N), (0, N_pad - N)))
    adjT = jnp.transpose(adj_pad, (0, 2, 1))                     # (B, Np, Np)

    vm = pl.BlockSpec(memory_space=pltpu.MemorySpace.VMEM)
    sm = pl.BlockSpec(memory_space=pltpu.MemorySpace.SMEM)
    args = [xT, adjT,
            params["w1_rel"], params["w1_root"], params["b1"],
            params["w2_rel"], params["w2_root"], params["b2"],
            params["w3_rel"], params["w3_root"], params["b3"],
            params["alphas"]]
    in_specs = [vm] * (len(args) - 1) + [sm]     # alphas live in SMEM

    # Advisory cost estimate for XLA's scheduler around this us-scale call.
    flops = 0
    c_prev = C
    for _ in range(3):
        flops += B * (2 * c_prev * N_pad * N_pad          # h^T @ adj^T
                      + 2 * 2 * H * c_prev * N_pad)       # two weight matmuls
        c_prev = H
    io_bytes = 4 * (xT.size + adjT.size + B * H * N_pad
                    + sum(int(a.size) for a in args[2:]))

    # Everything-resident design: make the VMEM assumption explicit, with
    # headroom.  Beyond a few-MiB working set (large N / B), switch to a grid
    # over graphs and tile adj rows instead of the unrolled loop.
    vmem_limit = min(max(2 * io_bytes + (1 << 20), 4 << 20), 64 << 20)

    # TODO(synk): on v7x, shard the B graphs across the two TensorCores via
    # grid=(B,) + dimension_semantics=("parallel",); single launch kept here
    # since per-step grid overhead dominates at these tiny sizes on v5e/v6e.
    outT = pl.pallas_call(
        connectome_kernel,
        in_specs=in_specs,
        out_specs=vm,
        out_shape=jax.ShapeDtypeStruct((B, H, N_pad), jnp.float32),
        compiler_params=pltpu.CompilerParams(vmem_limit_bytes=vmem_limit),
        cost_estimate=pl.CostEstimate(flops=flops, transcendentals=0,
                                      bytes_accessed=io_bytes),
    )(*args)

    # Back to node-major (PyTorch nn.Flatten order), drop padded nodes, flatten.
    out = jnp.transpose(outT, (0, 2, 1))[:, :N, :]               # (B, N, H)
    return out.reshape(B, N * H)


# ----------------------------- param builder -------------------------------- #

def init_params(key, in_channels, hidden_channels):
    keys = iter(jax.random.split(key, 12))

    def nrm(shape, scale=0.1):
        return (jax.random.normal(next(keys), shape) * scale).astype(jnp.float32)

    p = {}
    dims = [in_channels, hidden_channels, hidden_channels]
    for i in range(1, 4):
        c_in = dims[i - 1]
        # PyTorch nn.Linear layout (out_features, in_features), used directly
        # by the channels-first math (W @ h^T); no transpose needed when
        # loading trained weights.
        p[f"w{i}_rel"] = nrm((hidden_channels, c_in))     # lin_rel weight
        p[f"w{i}_root"] = nrm((hidden_channels, c_in))    # lin_root (bias-free)
        p[f"b{i}"] = nrm((hidden_channels, 1))            # lin_rel bias
    p["alphas"] = jnp.full((3,), 0.25, jnp.float32)       # nn.PReLU() default
    return p


# --------------------------- pure-JAX reference ------------------------------ #

def connectome_reference(x, adj, params):
    h = x
    for i in range(1, 4):
        wr = params[f"w{i}_rel"]
        wo = params[f"w{i}_root"]
        b = params[f"b{i}"][:, 0]
        agg = jnp.einsum("bij,bjc->bic", adj, h,
                         precision=jax.lax.Precision.HIGHEST)
        o = (jnp.einsum("bnc,hc->bnh", agg, wr,
                        precision=jax.lax.Precision.HIGHEST)
             + jnp.einsum("bnc,hc->bnh", h, wo,
                          precision=jax.lax.Precision.HIGHEST)
             + b)
        a = params["alphas"][i - 1]
        h = jnp.where(o > 0, o, a * o)
    return h.reshape(h.shape[0], -1)


# --------------------------------- main ------------------------------------- #

if __name__ == "__main__":
    key = jax.random.PRNGKey(0)

    B = 2          # batch of connectome graphs
    N = 87         # nodes per connectome graph
    C_IN = 8       # input channels
    HIDDEN = 32    # hidden channels

    kp, kx, kadj = jax.random.split(key, 3)
    params = init_params(kp, C_IN, HIDDEN)

    x = jax.random.normal(kx, (B, N, C_IN), jnp.float32)
    adj = jax.random.uniform(kadj, (B, N, N), jnp.float32)
    adj = 0.5 * (adj + jnp.transpose(adj, (0, 2, 1)))    # symmetric dense adjacency

    out = connectome_forward(x, adj, params)
    jax.block_until_ready(out)
    assert out.shape == (B, N * HIDDEN) and out.dtype == jnp.float32

    ref = connectome_reference(x, adj, params)
    jax.block_until_ready(ref)
    max_err = float(jnp.max(jnp.abs(out - ref)))
    assert max_err < 1e-2, f"mismatch vs reference: {max_err}"

    print("KERNEL_OK")
</pallas_src>

<mosaic_0001>
module attributes {stable_mosaic.version = 11 : i64} {
  func.func @connectome_kernel(%arg0: memref<2x8x128xf32, #tpu.memory_space<vmem>>, %arg1: memref<2x128x128xf32, #tpu.memory_space<vmem>>, %arg2: memref<32x8xf32, #tpu.memory_space<vmem>>, %arg3: memref<32x8xf32, #tpu.memory_space<vmem>>, %arg4: memref<32x1xf32, #tpu.memory_space<vmem>>, %arg5: memref<32x32xf32, #tpu.memory_space<vmem>>, %arg6: memref<32x32xf32, #tpu.memory_space<vmem>>, %arg7: memref<32x1xf32, #tpu.memory_space<vmem>>, %arg8: memref<32x32xf32, #tpu.memory_space<vmem>>, %arg9: memref<32x32xf32, #tpu.memory_space<vmem>>, %arg10: memref<32x1xf32, #tpu.memory_space<vmem>>, %arg11: memref<3xf32, #tpu.memory_space<smem>>, %arg12: memref<2x32x128xf32, #tpu.memory_space<vmem>>) attributes {dimension_semantics = [], scalar_prefetch = 0 : i64, scratch_operands = 0 : i64, tpu.core_type = #tpu.core_type<tc>} {
    %c0 = arith.constant 0 : index
    %0 = memref.load %arg11[%c0] : memref<3xf32, #tpu.memory_space<smem>>
    %c1 = arith.constant 1 : index
    %1 = memref.load %arg11[%c1] : memref<3xf32, #tpu.memory_space<smem>>
    %c2 = arith.constant 2 : index
    %2 = memref.load %arg11[%c2] : memref<3xf32, #tpu.memory_space<smem>>
    %c0_0 = arith.constant 0 : index
    %c0_1 = arith.constant 0 : index
    %3 = vector.load %arg2[%c0_0, %c0_1] : memref<32x8xf32, #tpu.memory_space<vmem>>, vector<32x8xf32>
    %c0_2 = arith.constant 0 : index
    %c0_3 = arith.constant 0 : index
    %4 = vector.load %arg3[%c0_2, %c0_3] : memref<32x8xf32, #tpu.memory_space<vmem>>, vector<32x8xf32>
    %c0_4 = arith.constant 0 : index
    %c0_5 = arith.constant 0 : index
    %5 = vector.load %arg4[%c0_4, %c0_5] : memref<32x1xf32, #tpu.memory_space<vmem>>, vector<32x1xf32>
    %c0_6 = arith.constant 0 : index
    %c0_7 = arith.constant 0 : index
    %6 = vector.load %arg5[%c0_6, %c0_7] : memref<32x32xf32, #tpu.memory_space<vmem>>, vector<32x32xf32>
    %c0_8 = arith.constant 0 : index
    %c0_9 = arith.constant 0 : index
    %7 = vector.load %arg6[%c0_8, %c0_9] : memref<32x32xf32, #tpu.memory_space<vmem>>, vector<32x32xf32>
    %c0_10 = arith.constant 0 : index
    %c0_11 = arith.constant 0 : index
    %8 = vector.load %arg7[%c0_10, %c0_11] : memref<32x1xf32, #tpu.memory_space<vmem>>, vector<32x1xf32>
    %c0_12 = arith.constant 0 : index
    %c0_13 = arith.constant 0 : index
    %9 = vector.load %arg8[%c0_12, %c0_13] : memref<32x32xf32, #tpu.memory_space<vmem>>, vector<32x32xf32>
    %c0_14 = arith.constant 0 : index
    %c0_15 = arith.constant 0 : index
    %10 = vector.load %arg9[%c0_14, %c0_15] : memref<32x32xf32, #tpu.memory_space<vmem>>, vector<32x32xf32>
    %c0_16 = arith.constant 0 : index
    %c0_17 = arith.constant 0 : index
    %11 = vector.load %arg10[%c0_16, %c0_17] : memref<32x1xf32, #tpu.memory_space<vmem>>, vector<32x1xf32>
    %c0_18 = arith.constant 0 : index
    %c0_19 = arith.constant 0 : index
    %c0_20 = arith.constant 0 : index
    %12 = vector.load %arg1[%c0_18, %c0_19, %c0_20] : memref<2x128x128xf32, #tpu.memory_space<vmem>>, vector<1x128x128xf32>
    %13 = vector.shape_cast %12 : vector<1x128x128xf32> to vector<128x128xf32>
    %c0_21 = arith.constant 0 : index
    %c0_22 = arith.constant 0 : index
    %c0_23 = arith.constant 0 : index
    %14 = vector.load %arg0[%c0_21, %c0_22, %c0_23] : memref<2x8x128xf32, #tpu.memory_space<vmem>>, vector<1x8x128xf32>
    %15 = vector.shape_cast %14 : vector<1x8x128xf32> to vector<8x128xf32>
    %cst = arith.constant dense<0.000000e+00> : vector<8x128xf32>
    %16 = tpu.matmul %15, %13, %cst {dimension_numbers = #tpu.dot_dimension_numbers<[1], [0], [0], [1], [0, 0, 1, 1], [], []>} : vector<8x128xf32>, vector<128x128xf32>, vector<8x128xf32> -> vector<8x128xf32>
    %cst_24 = arith.constant dense<0.000000e+00> : vector<32x128xf32>
    %17 = tpu.matmul %3, %16, %cst_24 {dimension_numbers = #tpu.dot_dimension_numbers<[1], [0], [0], [1], [0, 0, 1, 1], [], []>} : vector<32x8xf32>, vector<8x128xf32>, vector<32x128xf32> -> vector<32x128xf32>
    %cst_25 = arith.constant dense<0.000000e+00> : vector<32x128xf32>
    %18 = tpu.matmul %4, %15, %cst_25 {dimension_numbers = #tpu.dot_dimension_numbers<[1], [0], [0], [1], [0, 0, 1, 1], [], []>} : vector<32x8xf32>, vector<8x128xf32>, vector<32x128xf32> -> vector<32x128xf32>
    %19 = arith.addf %17, %18 : vector<32x128xf32>
    %20 = vector.broadcast %5 : vector<32x1xf32> to vector<32x128xf32>
    %21 = arith.addf %19, %20 : vector<32x128xf32>
    %cst_26 = arith.constant 0.000000e+00 : f32
    %22 = vector.broadcast %cst_26 : f32 to vector<32x128xf32>
    %23 = arith.cmpf ogt, %21, %22 : vector<32x128xf32>
    %24 = vector.broadcast %0 : f32 to vector<32x128xf32>
    %25 = arith.mulf %24, %21 : vector<32x128xf32>
    %26 = arith.select %23, %21, %25 : vector<32x128xi1>, vector<32x128xf32>
    %cst_27 = arith.constant dense<0.000000e+00> : vector<32x128xf32>
    %27 = tpu.matmul %26, %13, %cst_27 {dimension_numbers = #tpu.dot_dimension_numbers<[1], [0], [0], [1], [0, 0, 1, 1], [], []>} : vector<32x128xf32>, vector<128x128xf32>, vector<32x128xf32> -> vector<32x128xf32>
    %cst_28 = arith.constant dense<0.000000e+00> : vector<32x128xf32>
    %28 = tpu.matmul %6, %27, %cst_28 {dimension_numbers = #tpu.dot_dimension_numbers<[1], [0], [0], [1], [0, 0, 1, 1], [], []>} : vector<32x32xf32>, vector<32x128xf32>, vector<32x128xf32> -> vector<32x128xf32>
    %cst_29 = arith.constant dense<0.000000e+00> : vector<32x128xf32>
    %29 = tpu.matmul %7, %26, %cst_29 {dimension_numbers = #tpu.dot_dimension_numbers<[1], [0], [0], [1], [0, 0, 1, 1], [], []>} : vector<32x32xf32>, vector<32x128xf32>, vector<32x128xf32> -> vector<32x128xf32>
    %30 = arith.addf %28, %29 : vector<32x128xf32>
    %31 = vector.broadcast %8 : vector<32x1xf32> to vector<32x128xf32>
    %32 = arith.addf %30, %31 : vector<32x128xf32>
    %cst_30 = arith.constant 0.000000e+00 : f32
    %33 = vector.broadcast %cst_30 : f32 to vector<32x128xf32>
    %34 = arith.cmpf ogt, %32, %33 : vector<32x128xf32>
    %35 = vector.broadcast %1 : f32 to vector<32x128xf32>
    %36 = arith.mulf %35, %32 : vector<32x128xf32>
    %37 = arith.select %34, %32, %36 : vector<32x128xi1>, vector<32x128xf32>
    %cst_31 = arith.constant dense<0.000000e+00> : vector<32x128xf32>
    %38 = tpu.matmul %37, %13, %cst_31 {dimension_numbers = #tpu.dot_dimension_numbers<[1], [0], [0], [1], [0, 0, 1, 1], [], []>} : vector<32x128xf32>, vector<128x128xf32>, vector<32x128xf32> -> vector<32x128xf32>
    %cst_32 = arith.constant dense<0.000000e+00> : vector<32x128xf32>
    %39 = tpu.matmul %9, %38, %cst_32 {dimension_numbers = #tpu.dot_dimension_numbers<[1], [0], [0], [1], [0, 0, 1, 1], [], []>} : vector<32x32xf32>, vector<32x128xf32>, vector<32x128xf32> -> vector<32x128xf32>
    %cst_33 = arith.constant dense<0.000000e+00> : vector<32x128xf32>
    %40 = tpu.matmul %10, %37, %cst_33 {dimension_numbers = #tpu.dot_dimension_numbers<[1], [0], [0], [1], [0, 0, 1, 1], [], []>} : vector<32x32xf32>, vector<32x128xf32>, vector<32x128xf32> -> vector<32x128xf32>
    %41 = arith.addf %39, %40 : vector<32x128xf32>
    %42 = vector.broadcast %11 : vector<32x1xf32> to vector<32x128xf32>
    %43 = arith.addf %41, %42 : vector<32x128xf32>
    %cst_34 = arith.constant 0.000000e+00 : f32
    %44 = vector.broadcast %cst_34 : f32 to vector<32x128xf32>
    %45 = arith.cmpf ogt, %43, %44 : vector<32x128xf32>
    %46 = vector.broadcast %2 : f32 to vector<32x128xf32>
    %47 = arith.mulf %46, %43 : vector<32x128xf32>
    %48 = arith.select %45, %43, %47 : vector<32x128xi1>, vector<32x128xf32>
    %c0_35 = arith.constant 0 : index
    %c0_36 = arith.constant 0 : index
    %c0_37 = arith.constant 0 : index
    %49 = vector.load %arg12[%c0_35, %c0_36, %c0_37] : memref<2x32x128xf32, #tpu.memory_space<vmem>>, vector<1x32x128xf32>
    %50 = vector.shape_cast %49 : vector<1x32x128xf32> to vector<32x128xf32>
    %51 = vector.shape_cast %48 : vector<32x128xf32> to vector<1x32x128xf32>
    tpu.vector_store %arg12[%c0_35, %c0_36, %c0_37], %51 {strides = array<i32>} : memref<2x32x128xf32, #tpu.memory_space<vmem>>, vector<1x32x128xf32>,
    %c1_38 = arith.constant 1 : index
    %c0_39 = arith.constant 0 : index
    %c0_40 = arith.constant 0 : index
    %52 = vector.load %arg1[%c1_38, %c0_39, %c0_40] : memref<2x128x128xf32, #tpu.memory_space<vmem>>, vector<1x128x128xf32>
    %53 = vector.shape_cast %52 : vector<1x128x128xf32> to vector<128x128xf32>
    %c1_41 = arith.constant 1 : index
    %c0_42 = arith.constant 0 : index
    %c0_43 = arith.constant 0 : index
    %54 = vector.load %arg0[%c1_41, %c0_42, %c0_43] : memref<2x8x128xf32, #tpu.memory_space<vmem>>, vector<1x8x128xf32>
    %55 = vector.shape_cast %54 : vector<1x8x128xf32> to vector<8x128xf32>
    %cst_44 = arith.constant dense<0.000000e+00> : vector<8x128xf32>
    %56 = tpu.matmul %55, %53, %cst_44 {dimension_numbers = #tpu.dot_dimension_numbers<[1], [0], [0], [1], [0, 0, 1, 1], [], []>} : vector<8x128xf32>, vector<128x128xf32>, vector<8x128xf32> -> vector<8x128xf32>
    %cst_45 = arith.constant dense<0.000000e+00> : vector<32x128xf32>
    %57 = tpu.matmul %3, %56, %cst_45 {dimension_numbers = #tpu.dot_dimension_numbers<[1], [0], [0], [1], [0, 0, 1, 1], [], []>} : vector<32x8xf32>, vector<8x128xf32>, vector<32x128xf32> -> vector<32x128xf32>
    %cst_46 = arith.constant dense<0.000000e+00> : vector<32x128xf32>
    %58 = tpu.matmul %4, %55, %cst_46 {dimension_numbers = #tpu.dot_dimension_numbers<[1], [0], [0], [1], [0, 0, 1, 1], [], []>} : vector<32x8xf32>, vector<8x128xf32>, vector<32x128xf32> -> vector<32x128xf32>
    %59 = arith.addf %57, %58 : vector<32x128xf32>
    %60 = vector.broadcast %5 : vector<32x1xf32> to vector<32x128xf32>
    %61 = arith.addf %59, %60 : vector<32x128xf32>
    %cst_47 = arith.constant 0.000000e+00 : f32
    %62 = vector.broadcast %cst_47 : f32 to vector<32x128xf32>
    %63 = arith.cmpf ogt, %61, %62 : vector<32x128xf32>
    %64 = vector.broadcast %0 : f32 to vector<32x128xf32>
    %65 = arith.mulf %64, %61 : vector<32x128xf32>
    %66 = arith.select %63, %61, %65 : vector<32x128xi1>, vector<32x128xf32>
    %cst_48 = arith.constant dense<0.000000e+00> : vector<32x128xf32>
    %67 = tpu.matmul %66, %53, %cst_48 {dimension_numbers = #tpu.dot_dimension_numbers<[1], [0], [0], [1], [0, 0, 1, 1], [], []>} : vector<32x128xf32>, vector<128x128xf32>, vector<32x128xf32> -> vector<32x128xf32>
    %cst_49 = arith.constant dense<0.000000e+00> : vector<32x128xf32>
    %68 = tpu.matmul %6, %67, %cst_49 {dimension_numbers = #tpu.dot_dimension_numbers<[1], [0], [0], [1], [0, 0, 1, 1], [], []>} : vector<32x32xf32>, vector<32x128xf32>, vector<32x128xf32> -> vector<32x128xf32>
    %cst_50 = arith.constant dense<0.000000e+00> : vector<32x128xf32>
    %69 = tpu.matmul %7, %66, %cst_50 {dimension_numbers = #tpu.dot_dimension_numbers<[1], [0], [0], [1], [0, 0, 1, 1], [], []>} : vector<32x32xf32>, vector<32x128xf32>, vector<32x128xf32> -> vector<32x128xf32>
    %70 = arith.addf %68, %69 : vector<32x128xf32>
    %71 = vector.broadcast %8 : vector<32x1xf32> to vector<32x128xf32>
    %72 = arith.addf %70, %71 : vector<32x128xf32>
    %cst_51 = arith.constant 0.000000e+00 : f32
    %73 = vector.broadcast %cst_51 : f32 to vector<32x128xf32>
    %74 = arith.cmpf ogt, %72, %73 : vector<32x128xf32>
    %75 = vector.broadcast %1 : f32 to vector<32x128xf32>
    %76 = arith.mulf %75, %72 : vector<32x128xf32>
    %77 = arith.select %74, %72, %76 : vector<32x128xi1>, vector<32x128xf32>
    %cst_52 = arith.constant dense<0.000000e+00> : vector<32x128xf32>
    %78 = tpu.matmul %77, %53, %cst_52 {dimension_numbers = #tpu.dot_dimension_numbers<[1], [0], [0], [1], [0, 0, 1, 1], [], []>} : vector<32x128xf32>, vector<128x128xf32>, vector<32x128xf32> -> vector<32x128xf32>
    %cst_53 = arith.constant dense<0.000000e+00> : vector<32x128xf32>
    %79 = tpu.matmul %9, %78, %cst_53 {dimension_numbers = #tpu.dot_dimension_numbers<[1], [0], [0], [1], [0, 0, 1, 1], [], []>} : vector<32x32xf32>, vector<32x128xf32>, vector<32x128xf32> -> vector<32x128xf32>
    %cst_54 = arith.constant dense<0.000000e+00> : vector<32x128xf32>
    %80 = tpu.matmul %10, %77, %cst_54 {dimension_numbers = #tpu.dot_dimension_numbers<[1], [0], [0], [1], [0, 0, 1, 1], [], []>} : vector<32x32xf32>, vector<32x128xf32>, vector<32x128xf32> -> vector<32x128xf32>
    %81 = arith.addf %79, %80 : vector<32x128xf32>
    %82 = vector.broadcast %11 : vector<32x1xf32> to vector<32x128xf32>
    %83 = arith.addf %81, %82 : vector<32x128xf32>
    %cst_55 = arith.constant 0.000000e+00 : f32
    %84 = vector.broadcast %cst_55 : f32 to vector<32x128xf32>
    %85 = arith.cmpf ogt, %83, %84 : vector<32x128xf32>
    %86 = vector.broadcast %2 : f32 to vector<32x128xf32>
    %87 = arith.mulf %86, %83 : vector<32x128xf32>
    %88 = arith.select %85, %83, %87 : vector<32x128xi1>, vector<32x128xf32>
    %c1_56 = arith.constant 1 : index
    %c0_57 = arith.constant 0 : index
    %c0_58 = arith.constant 0 : index
    %89 = vector.load %arg12[%c1_56, %c0_57, %c0_58] : memref<2x32x128xf32, #tpu.memory_space<vmem>>, vector<1x32x128xf32>
    %90 = vector.shape_cast %89 : vector<1x32x128xf32> to vector<32x128xf32>
    %91 = vector.shape_cast %88 : vector<32x128xf32> to vector<1x32x128xf32>
    tpu.vector_store %arg12[%c1_56, %c0_57, %c0_58], %91 {strides = array<i32>} : memref<2x32x128xf32, #tpu.memory_space<vmem>>, vector<1x32x128xf32>,
    return
  }
}

</mosaic_0001>

<llo_original>
// kernel: tpu_custom_call.1
$region0: #{tpu_custom_call.1}
  #allocation0 [shape = 'u32[]', space=smem, size = 0x4, offset = 0x4, fixed_abs, tag = 'smem constant byte address 0x4 - core index']
  #allocation1 [shape = 'u32[72,128]{1,0:T(1,128)}', space=vmem, size = 0x9000, scoped, tag = 'internal scratch']
  %s0 = inlined_call_operand.vmem [shape: f32[2,8,128], index: 0, kind: input, shape index: {}]
  %s1 = inlined_call_operand.hbm [shape: f32[2,128,128], index: 1, kind: input, shape index: {}]
  %s2 = inlined_call_operand.vmem [shape: f32[32,8], index: 2, kind: input, shape index: {}]
  %s3 = inlined_call_operand.vmem [shape: f32[32,8], index: 3, kind: input, shape index: {}]
  %s4 = inlined_call_operand.vmem [shape: f32[32,1], index: 4, kind: input, shape index: {}]
  %s5 = inlined_call_operand.vmem [shape: f32[32,32], index: 5, kind: input, shape index: {}]
  %s6 = inlined_call_operand.vmem [shape: f32[32,32], index: 6, kind: input, shape index: {}]
  %s7 = inlined_call_operand.vmem [shape: f32[32,1], index: 7, kind: input, shape index: {}]
  %s8 = inlined_call_operand.vmem [shape: f32[32,32], index: 8, kind: input, shape index: {}]
  %s9 = inlined_call_operand.vmem [shape: f32[32,32], index: 9, kind: input, shape index: {}]
  %s10 = inlined_call_operand.vmem [shape: f32[32,1], index: 10, kind: input, shape index: {}]
  %s11 = inlined_call_operand.vmem [shape: f32[3], index: 11, kind: input, shape index: {}]
  %s12 = inlined_call_operand.hbm [shape: f32[2,32,128], index: 12, kind: output, shape index: {}]
  %s13 = sld [smem:[#allocation0]]
  $region66: #{tpu_custom_call.1} parent=0
    _
  %s15 = ssub.s32 1, %s13
  %s16 = scalar_select 0, %s15, %s13
  $region1: #{tpu_custom_call.1} parent=0
    #allocation2 [shape = 'u8[131072]{0}', space=vmem, size = 0x20000, scoped, tag = 'input window, operand 1, single buffered']
    #allocation3 [shape = 's32[1]{0}', space=sflag, size = 0x4, scoped, tag = 'scoped memory for tpu_custom_call.1']
    #allocation4 [shape = 's32[1]{0}', space=sflag, size = 0x4, scoped, tag = 'scoped memory for tpu_custom_call.1']
    #allocation5 [shape = 's32[1]{0}', space=sflag, size = 0x4, scoped, tag = 'scoped memory for tpu_custom_call.1']
    #allocation6 [shape = 'u8[512]{0}', space=smem, size = 0x200, scoped, tag = 'input window, operand 11, single buffered']
    #allocation7 [shape = 'u8[32768]{0}', space=vmem, size = 0x8000, scoped, tag = 'output window, operand 0, single buffered']
    %17 = vsyncpa [#allocation3], 0
    %18 = vsyncpa [#allocation5], 0
    %19 = vsyncpa [#allocation4], 0
    // Predicated region
    $region2: #{tpu_custom_call.1} parent=1 // pred_check
      _
    $region3: #{tpu_custom_call.1} parent=1 // pred_check_branch
      %21 = sbr.rel (0) target = $region5
    $region4: #{tpu_custom_call.1} parent=1 // pred_region
      _
    $region5: #{tpu_custom_call.1} parent=1 // pred_fallthru
      _
    // Predicated region
    $region6: #{tpu_custom_call.1} parent=1 // pred_check
      _
    $region7: #{tpu_custom_call.1} parent=1 // pred_check_branch
      %23 = sbr.rel (0) target = $region9
    $region8: #{tpu_custom_call.1} parent=1 // pred_region
      %25 = vsyncadd [#allocation3], 0
      %s26 = sshll.u32 %s1, 4
      %s27 = int_to_ptr.hbm [resolvable:$true] %s26
      %s28 = sshll.u32 [#allocation2], 4
      %s29 = int_to_ptr.vmem [resolvable:$true] %s28
      %34 = dma.hbm_to_vmem [thread:$0]  %s27, 4096, %s29, [#allocation3], 128, 128, 8
    $region9: #{tpu_custom_call.1} parent=1 // pred_fallthru
      _
    // Predicated region
    $region10: #{tpu_custom_call.1} parent=1 // pred_check
      _
    $region11: #{tpu_custom_call.1} parent=1 // pred_check_branch
      %36 = sbr.rel (0) target = $region13
    $region12: #{tpu_custom_call.1} parent=1 // pred_region
      _
    $region13: #{tpu_custom_call.1} parent=1 // pred_fallthru
      _
    // Predicated region
    $region14: #{tpu_custom_call.1} parent=1 // pred_check
      _
    $region15: #{tpu_custom_call.1} parent=1 // pred_check_branch
      %38 = sbr.rel (0) target = $region17
    $region16: #{tpu_custom_call.1} parent=1 // pred_region
      _
    $region17: #{tpu_custom_call.1} parent=1 // pred_fallthru
      _
    // Predicated region
    $region18: #{tpu_custom_call.1} parent=1 // pred_check
      _
    $region19: #{tpu_custom_call.1} parent=1 // pred_check_branch
      %40 = sbr.rel (0) target = $region21
    $region20: #{tpu_custom_call.1} parent=1 // pred_region
      _
    $region21: #{tpu_custom_call.1} parent=1 // pred_fallthru
      _
    // Predicated region
    $region22: #{tpu_custom_call.1} parent=1 // pred_check
      _
    $region23: #{tpu_custom_call.1} parent=1 // pred_check_branch
      %42 = sbr.rel (0) target = $region25
    $region24: #{tpu_custom_call.1} parent=1 // pred_region
      _
    $region25: #{tpu_custom_call.1} parent=1 // pred_fallthru
      _
    // Predicated region
    $region26: #{tpu_custom_call.1} parent=1 // pred_check
      _
    $region27: #{tpu_custom_call.1} parent=1 // pred_check_branch
      %44 = sbr.rel (0) target = $region29
    $region28: #{tpu_custom_call.1} parent=1 // pred_region
      _
    $region29: #{tpu_custom_call.1} parent=1 // pred_fallthru
      _
    // Predicated region
    $region30: #{tpu_custom_call.1} parent=1 // pred_check
      _
    $region31: #{tpu_custom_call.1} parent=1 // pred_check_branch
      %46 = sbr.rel (0) target = $region33
    $region32: #{tpu_custom_call.1} parent=1 // pred_region
      _
    $region33: #{tpu_custom_call.1} parent=1 // pred_fallthru
      _
    // Predicated region
    $region34: #{tpu_custom_call.1} parent=1 // pred_check
      _
    $region35: #{tpu_custom_call.1} parent=1 // pred_check_branch
      %48 = sbr.rel (0) target = $region37
    $region36: #{tpu_custom_call.1} parent=1 // pred_region
      _
    $region37: #{tpu_custom_call.1} parent=1 // pred_fallthru
      _
    // Predicated region
    $region38: #{tpu_custom_call.1} parent=1 // pred_check
      _
    $region39: #{tpu_custom_call.1} parent=1 // pred_check_branch
      %50 = sbr.rel (0) target = $region41
    $region40: #{tpu_custom_call.1} parent=1 // pred_region
      _
    $region41: #{tpu_custom_call.1} parent=1 // pred_fallthru
      _
    // Predicated region
    $region42: #{tpu_custom_call.1} parent=1 // pred_check
      _
    $region43: #{tpu_custom_call.1} parent=1 // pred_check_branch
      %52 = sbr.rel (0) target = $region45
    $region44: #{tpu_custom_call.1} parent=1 // pred_region
      _
    $region45: #{tpu_custom_call.1} parent=1 // pred_fallthru
      _
    // Predicated region
    $region46: #{tpu_custom_call.1} parent=1 // pred_check
      _
    $region47: #{tpu_custom_call.1} parent=1 // pred_check_branch
      %54 = sbr.rel (0) target = $region49
    $region48: #{tpu_custom_call.1} parent=1 // pred_region
      %56 = vsyncadd [#allocation5], 0
      %s58 = sshll.u32 %s11, 4
      %s59 = int_to_ptr.vmem [resolvable:$true] %s58
      %61 = dma.vmem_to_smem %s59, 16, [#allocation6], [#allocation5]
    $region49: #{tpu_custom_call.1} parent=1 // pred_fallthru
      _
    // Predicated region
    $region50: #{tpu_custom_call.1} parent=1 // pred_check
      _
    $region51: #{tpu_custom_call.1} parent=1 // pred_check_branch
      %63 = sbr.rel (0) target = $region53
    $region52: #{tpu_custom_call.1} parent=1 // pred_region
      %65 = dma.done [#allocation3], 4096
    $region53: #{tpu_custom_call.1} parent=1 // pred_fallthru
      _
    // Predicated region
    $region54: #{tpu_custom_call.1} parent=1 // pred_check
      _
    $region55: #{tpu_custom_call.1} parent=1 // pred_check_branch
      %67 = sbr.rel (0) target = $region57
    $region56: #{tpu_custom_call.1} parent=1 // pred_region
      %69 = dma.done [#allocation5], 16
    $region57: #{tpu_custom_call.1} parent=1 // pred_fallthru
      _
    %70 = sfence
    %s71 = sld [smem:[#allocation6]]
    %s72 = sld [smem:[#allocation6 + $0x1]]
    %s73 = sld [smem:[#allocation6 + $0x2]]
    %v74 = vld [vmem:[%s2] sm:$0xff]
    %v75 = vld [vmem:[%s2 + $0x8] sm:$0xff]
    %v76 = vld [vmem:[%s2 + $0x10] sm:$0xff]
    %v77 = vld [vmem:[%s2 + $0x18] sm:$0xff]
    %v78 = vld [vmem:[%s3] sm:$0xff]
    %v79 = vld [vmem:[%s3 + $0x8] sm:$0xff]
    %v80 = vld [vmem:[%s3 + $0x10] sm:$0xff]
    %v81 = vld [vmem:[%s3 + $0x18] sm:$0xff]
    %v82 = vld [vmem:[%s4] sm:$0xff]
    %v83 = vld [vmem:[%s4 + $0x8] sm:$0xff]
    %v84 = vld [vmem:[%s4 + $0x10] sm:$0xff]
    %v85 = vld [vmem:[%s4 + $0x18] sm:$0xff]
    %v86 = vld [vmem:[%s5] sm:$0xff]
    %v87 = vld [vmem:[%s5 + $0x8] sm:$0xff]
    %v88 = vld [vmem:[%s5 + $0x10] sm:$0xff]
    %v89 = vld [vmem:[%s5 + $0x18] sm:$0xff]
    %v90 = vld [vmem:[%s6] sm:$0xff]
    %v91 = vld [vmem:[%s6 + $0x8] sm:$0xff]
    %v92 = vld [vmem:[%s6 + $0x10] sm:$0xff]
    %v93 = vld [vmem:[%s6 + $0x18] sm:$0xff]
    %v94 = vld [vmem:[%s7] sm:$0xff]
    %v95 = vld [vmem:[%s7 + $0x8] sm:$0xff]
    %v96 = vld [vmem:[%s7 + $0x10] sm:$0xff]
    %v97 = vld [vmem:[%s7 + $0x18] sm:$0xff]
    %v98 = vld [vmem:[%s8] sm:$0xff]
    %v99 = vld [vmem:[%s8 + $0x8] sm:$0xff]
    %v100 = vld [vmem:[%s8 + $0x10] sm:$0xff]
    %v101 = vld [vmem:[%s8 + $0x18] sm:$0xff]
    %v102 = vld [vmem:[%s9] sm:$0xff]
    %v103 = vld [vmem:[%s9 + $0x8] sm:$0xff]
    %v104 = vld [vmem:[%s9 + $0x10] sm:$0xff]
    %v105 = vld [vmem:[%s9 + $0x18] sm:$0xff]
    %v106 = vld [vmem:[%s10] sm:$0xff]
    %v107 = vld [vmem:[%s10 + $0x8] sm:$0xff]
    %v108 = vld [vmem:[%s10 + $0x10] sm:$0xff]
    %v109 = vld [vmem:[%s10 + $0x18] sm:$0xff]
    %v110 = vld [vmem:[#allocation2] sm:$0xff]
    %v111 = vld [vmem:[#allocation2 + $0x8] sm:$0xff]
    %v112 = vld [vmem:[#allocation2 + $0x10] sm:$0xff]
    %v113 = vld [vmem:[#allocation2 + $0x18] sm:$0xff]
    %v114 = vld [vmem:[#allocation2 + $0x20] sm:$0xff]
    %v115 = vld [vmem:[#allocation2 + $0x28] sm:$0xff]
    %v116 = vld [vmem:[#allocation2 + $0x30] sm:$0xff]
    %v117 = vld [vmem:[#allocation2 + $0x38] sm:$0xff]
    %v118 = vld [vmem:[#allocation2 + $0x40] sm:$0xff]
    %v119 = vld [vmem:[#allocation2 + $0x48] sm:$0xff]
    %v120 = vld [vmem:[#allocation2 + $0x50] sm:$0xff]
    %v121 = vld [vmem:[#allocation2 + $0x58] sm:$0xff]
    %v122 = vld [vmem:[#allocation2 + $0x60] sm:$0xff]
    %v123 = vld [vmem:[#allocation2 + $0x68] sm:$0xff]
    %v124 = vld [vmem:[#allocation2 + $0x70] sm:$0xff]
    %v125 = vld [vmem:[#allocation2 + $0x78] sm:$0xff]
    %v126 = vld [vmem:[%s0] sm:$0xff]
    %127 = vmatpush.msra.mxu0 %v125
    %128 = vmatpush.msra.mxu0 %v124
    %129 = vmatpush.msra.mxu0 %v123
    %130 = vmatpush.msra.mxu0 %v122
    %131 = vmatpush.msra.mxu0 %v121
    %132 = vmatpush.msra.mxu0 %v120
    %133 = vmatpush.msra.mxu0 %v119
    %134 = vmatpush.msra.mxu0 %v118
    %135 = vmatpush.msra.mxu0 %v117
    %136 = vmatpush.msra.mxu0 %v116
    %137 = vmatpush.msra.mxu0 %v115
    %138 = vmatpush.msra.mxu0 %v114
    %139 = vmatpush.msra.mxu0 %v113
    %140 = vmatpush.msra.mxu0 %v112
    %141 = vmatpush.msra.mxu0 %v111
    %142 = vmatpush.msra.mxu0 %v110
    %143 = vmatmul.f32.gmra.mxu0 %v126
    %v144 = vpop.f32.mrf.mxu0
    %v145 = vadd.f32 0.0, %v144
    %146 = vdwg.mxu0
    %vm147 = vcmask 64512
    %v149 = vsel %vm147, %v78, 0
    %v152 = vsel %vm147, %v79, 0
    %v155 = vsel %vm147, %v80, 0
    %v158 = vsel %vm147, %v81, 0
    %160 = vmatpush.msra.mxu0 0.0
    %161 = vmatpush.msra.mxu0 0.0
    %162 = vmatpush.msra.mxu0 0.0
    %163 = vmatpush.msra.mxu0 0.0
    %164 = vmatpush.msra.mxu0 0.0
    %165 = vmatpush.msra.mxu0 0.0
    %166 = vmatpush.msra.mxu0 0.0
    %167 = vmatpush.msra.mxu0 0.0
    %168 = vmatpush.msra.mxu0 0.0
    %169 = vmatpush.msra.mxu0 0.0
    %170 = vmatpush.msra.mxu0 0.0
    %171 = vmatpush.msra.mxu0 0.0
    %172 = vmatpush.msra.mxu0 0.0
    %173 = vmatpush.msra.mxu0 0.0
    %174 = vmatpush.msra.mxu0 0.0
    %175 = vmatpush.msra.mxu0 %v126
    %176 = vmatmul.f32.gmra.mxu0 %v149
    %v177 = vpop.f32.mrf.mxu0
    %v178 = vadd.f32 0.0, %v177
    %179 = vmatmul.f32.gmra.mxu0 %v152
    %v180 = vpop.f32.mrf.mxu0
    %v181 = vadd.f32 0.0, %v180
    %182 = vmatmul.f32.gmra.mxu0 %v155
    %v183 = vpop.f32.mrf.mxu0
    %v184 = vadd.f32 0.0, %v183
    %185 = vmatmul.f32.gmra.mxu0 %v158
    %v186 = vpop.f32.mrf.mxu0
    %v187 = vadd.f32 0.0, %v186
    %188 = vdwg.mxu0
    %v190 = vsel %vm147, %v74, 0
    %v193 = vsel %vm147, %v75, 0
    %v196 = vsel %vm147, %v76, 0
    %v199 = vsel %vm147, %v77, 0
    %201 = vmatpush.msra.mxu0 0.0
    %202 = vmatpush.msra.mxu0 0.0
    %203 = vmatpush.msra.mxu0 0.0
    %204 = vmatpush.msra.mxu0 0.0
    %205 = vmatpush.msra.mxu0 0.0
    %206 = vmatpush.msra.mxu0 0.0
    %207 = vmatpush.msra.mxu0 0.0
    %208 = vmatpush.msra.mxu0 0.0
    %209 = vmatpush.msra.mxu0 0.0
    %210 = vmatpush.msra.mxu0 0.0
    %211 = vmatpush.msra.mxu0 0.0
    %212 = vmatpush.msra.mxu0 0.0
    %213 = vmatpush.msra.mxu0 0.0
    %214 = vmatpush.msra.mxu0 0.0
    %215 = vmatpush.msra.mxu0 0.0
    %216 = vmatpush.msra.mxu0 %v145
    %217 = vmatmul.f32.gmra.mxu0 %v190
    %v218 = vpop.f32.mrf.mxu0
    %v219 = vadd.f32 %v178, %v218
    %220 = vmatmul.f32.gmra.mxu0 %v193
    %v221 = vpop.f32.mrf.mxu0
    %v222 = vadd.f32 %v181, %v221
    %223 = vmatmul.f32.gmra.mxu0 %v196
    %v224 = vpop.f32.mrf.mxu0
    %v225 = vadd.f32 %v184, %v224
    %226 = vmatmul.f32.gmra.mxu0 %v199
    %v227 = vpop.f32.mrf.mxu0
    %v228 = vadd.f32 %v187, %v227
    %229 = vdwg.mxu0
    %231 = vset.pattern.permute.xlu0 0
    %232 = vperm.xlu0 %231, %v82
    %v233 = vpop.permute.xlu0 %232
    %236 = vset.pattern.permute.xlu0 0
    %237 = vperm.xlu0 %236, %v83
    %v238 = vpop.permute.xlu0 %237
    %241 = vset.pattern.permute.xlu0 0
    %242 = vperm.xlu0 %241, %v84
    %v243 = vpop.permute.xlu0 %242
    %246 = vset.pattern.permute.xlu0 0
    %247 = vperm.xlu0 %246, %v85
    %v248 = vpop.permute.xlu0 %247
    %v250 = vadd.f32 %v219, %v233
    %v251 = vadd.f32 %v222, %v238
    %v252 = vadd.f32 %v225, %v243
    %v253 = vadd.f32 %v228, %v248
    %vm254 = vcmp.gt.f32.partialorder %v250, 0.0
    %vm255 = vcmp.gt.f32.partialorder %v251, 0.0
    %vm256 = vcmp.gt.f32.partialorder %v252, 0.0
    %vm257 = vcmp.gt.f32.partialorder %v253, 0.0
    %v258 = vstv %s71
    %v259 = vmul.f32 %v258, %v250
    %v260 = vmul.f32 %v258, %v251
    %v261 = vmul.f32 %v258, %v252
    %v262 = vmul.f32 %v258, %v253
    %v263 = vsel %vm254, %v250, %v259
    %v264 = vsel %vm255, %v251, %v260
    %v265 = vsel %vm256, %v252, %v261
    %v266 = vsel %vm257, %v253, %v262
    %267 = vmatpush.msra.mxu0 %v125
    %268 = vmatpush.msra.mxu0 %v124
    %269 = vmatpush.msra.mxu0 %v123
    %270 = vmatpush.msra.mxu0 %v122
    %271 = vmatpush.msra.mxu0 %v121
    %272 = vmatpush.msra.mxu0 %v120
    %273 = vmatpush.msra.mxu0 %v119
    %274 = vmatpush.msra.mxu0 %v118
    %275 = vmatpush.msra.mxu0 %v117
    %276 = vmatpush.msra.mxu0 %v116
    %277 = vmatpush.msra.mxu0 %v115
    %278 = vmatpush.msra.mxu0 %v114
    %279 = vmatpush.msra.mxu0 %v113
    %280 = vmatpush.msra.mxu0 %v112
    %281 = vmatpush.msra.mxu0 %v111
    %282 = vmatpush.msra.mxu0 %v110
    %283 = vmatmul.f32.gmra.mxu0 %v263
    %v284 = vpop.f32.mrf.mxu0
    %v285 = vadd.f32 0.0, %v284
    %286 = vmatmul.f32.gmra.mxu0 %v264
    %v287 = vpop.f32.mrf.mxu0
    %v288 = vadd.f32 0.0, %v287
    %289 = vmatmul.f32.gmra.mxu0 %v265
    %v290 = vpop.f32.mrf.mxu0
    %v291 = vadd.f32 0.0, %v290
    %292 = vmatmul.f32.gmra.mxu0 %v266
    %v293 = vpop.f32.mrf.mxu0
    %v294 = vadd.f32 0.0, %v293
    %295 = vdwg.mxu0
    %vm296 = vcmask 261120
    %v298 = vsel %vm296, %v90, 0
    %v301 = vsel %vm296, %v91, 0
    %v304 = vsel %vm296, %v92, 0
    %v307 = vsel %vm296, %v93, 0
    %309 = vmatpush.msra.mxu0 0.0
    %310 = vmatpush.msra.mxu0 0.0
    %311 = vmatpush.msra.mxu0 0.0
    %312 = vmatpush.msra.mxu0 0.0
    %313 = vmatpush.msra.mxu0 0.0
    %314 = vmatpush.msra.mxu0 0.0
    %315 = vmatpush.msra.mxu0 0.0
    %316 = vmatpush.msra.mxu0 0.0
    %317 = vmatpush.msra.mxu0 0.0
    %318 = vmatpush.msra.mxu0 0.0
    %319 = vmatpush.msra.mxu0 0.0
    %320 = vmatpush.msra.mxu0 0.0
    %321 = vmatpush.msra.mxu0 %v266
    %322 = vmatpush.msra.mxu0 %v265
    %323 = vmatpush.msra.mxu0 %v264
    %324 = vmatpush.msra.mxu0 %v263
    %325 = vmatmul.f32.gmra.mxu0 %v298
    %v326 = vpop.f32.mrf.mxu0
    %v327 = vadd.f32 0.0, %v326
    %328 = vmatmul.f32.gmra.mxu0 %v301
    %v329 = vpop.f32.mrf.mxu0
    %v330 = vadd.f32 0.0, %v329
    %331 = vmatmul.f32.gmra.mxu0 %v304
    %v332 = vpop.f32.mrf.mxu0
    %v333 = vadd.f32 0.0, %v332
    %334 = vmatmul.f32.gmra.mxu0 %v307
    %v335 = vpop.f32.mrf.mxu0
    %v336 = vadd.f32 0.0, %v335
    %337 = vdwg.mxu0
    %v339 = vsel %vm296, %v86, 0
    %v342 = vsel %vm296, %v87, 0
    %v345 = vsel %vm296, %v88, 0
    %v348 = vsel %vm296, %v89, 0
    %350 = vmatpush.msra.mxu0 0.0
    %351 = vmatpush.msra.mxu0 0.0
    %352 = vmatpush.msra.mxu0 0.0
    %353 = vmatpush.msra.mxu0 0.0
    %354 = vmatpush.msra.mxu0 0.0
    %355 = vmatpush.msra.mxu0 0.0
    %356 = vmatpush.msra.mxu0 0.0
    %357 = vmatpush.msra.mxu0 0.0
    %358 = vmatpush.msra.mxu0 0.0
    %359 = vmatpush.msra.mxu0 0.0
    %360 = vmatpush.msra.mxu0 0.0
    %361 = vmatpush.msra.mxu0 0.0
    %362 = vmatpush.msra.mxu0 %v294
    %363 = vmatpush.msra.mxu0 %v291
    %364 = vmatpush.msra.mxu0 %v288
    %365 = vmatpush.msra.mxu0 %v285
    %366 = vmatmul.f32.gmra.mxu0 %v339
    %v367 = vpop.f32.mrf.mxu0
    %v368 = vadd.f32 %v327, %v367
    %369 = vmatmul.f32.gmra.mxu0 %v342
    %v370 = vpop.f32.mrf.mxu0
    %v371 = vadd.f32 %v330, %v370
    %372 = vmatmul.f32.gmra.mxu0 %v345
    %v373 = vpop.f32.mrf.mxu0
    %v374 = vadd.f32 %v333, %v373
    %375 = vmatmul.f32.gmra.mxu0 %v348
    %v376 = vpop.f32.mrf.mxu0
    %v377 = vadd.f32 %v336, %v376
    %378 = vdwg.mxu0
    %380 = vset.pattern.permute.xlu0 0
    %381 = vperm.xlu0 %380, %v94
    %v382 = vpop.permute.xlu0 %381
    %385 = vset.pattern.permute.xlu0 0
    %386 = vperm.xlu0 %385, %v95
    %v387 = vpop.permute.xlu0 %386
    %390 = vset.pattern.permute.xlu0 0
    %391 = vperm.xlu0 %390, %v96
    %v392 = vpop.permute.xlu0 %391
    %395 = vset.pattern.permute.xlu0 0
    %396 = vperm.xlu0 %395, %v97
    %v397 = vpop.permute.xlu0 %396
    %v399 = vadd.f32 %v368, %v382
    %v400 = vadd.f32 %v371, %v387
    %v401 = vadd.f32 %v374, %v392
    %v402 = vadd.f32 %v377, %v397
    %vm403 = vcmp.gt.f32.partialorder %v399, 0.0
    %vm404 = vcmp.gt.f32.partialorder %v400, 0.0
    %vm405 = vcmp.gt.f32.partialorder %v401, 0.0
    %vm406 = vcmp.gt.f32.partialorder %v402, 0.0
    %v407 = vstv %s72
    %v408 = vmul.f32 %v407, %v399
    %v409 = vmul.f32 %v407, %v400
    %v410 = vmul.f32 %v407, %v401
    %v411 = vmul.f32 %v407, %v402
    %v412 = vsel %vm403, %v399, %v408
    %v413 = vsel %vm404, %v400, %v409
    %v414 = vsel %vm405, %v401, %v410
    %v415 = vsel %vm406, %v402, %v411
    %416 = vmatpush.msra.mxu0 %v125
    %417 = vmatpush.msra.mxu0 %v124
    %418 = vmatpush.msra.mxu0 %v123
    %419 = vmatpush.msra.mxu0 %v122
    %420 = vmatpush.msra.mxu0 %v121
    %421 = vmatpush.msra.mxu0 %v120
    %422 = vmatpush.msra.mxu0 %v119
    %423 = vmatpush.msra.mxu0 %v118
    %424 = vmatpush.msra.mxu0 %v117
    %425 = vmatpush.msra.mxu0 %v116
    %426 = vmatpush.msra.mxu0 %v115
    %427 = vmatpush.msra.mxu0 %v114
    %428 = vmatpush.msra.mxu0 %v113
    %429 = vmatpush.msra.mxu0 %v112
    %430 = vmatpush.msra.mxu0 %v111
    %431 = vmatpush.msra.mxu0 %v110
    %432 = vmatmul.f32.gmra.mxu0 %v412
    %v433 = vpop.f32.mrf.mxu0
    %v434 = vadd.f32 0.0, %v433
    %435 = vmatmul.f32.gmra.mxu0 %v413
    %v436 = vpop.f32.mrf.mxu0
    %v437 = vadd.f32 0.0, %v436
    %438 = vmatmul.f32.gmra.mxu0 %v414
    %v439 = vpop.f32.mrf.mxu0
    %v440 = vadd.f32 0.0, %v439
    %441 = vmatmul.f32.gmra.mxu0 %v415
    %v442 = vpop.f32.mrf.mxu0
    %v443 = vadd.f32 0.0, %v442
    %444 = vdwg.mxu0
    %v446 = vsel %vm296, %v102, 0
    %v449 = vsel %vm296, %v103, 0
    %v452 = vsel %vm296, %v104, 0
    %v455 = vsel %vm296, %v105, 0
    %457 = vmatpush.msra.mxu0 0.0
    %458 = vmatpush.msra.mxu0 0.0
    %459 = vmatpush.msra.mxu0 0.0
    %460 = vmatpush.msra.mxu0 0.0
    %461 = vmatpush.msra.mxu0 0.0
    %462 = vmatpush.msra.mxu0 0.0
    %463 = vmatpush.msra.mxu0 0.0
    %464 = vmatpush.msra.mxu0 0.0
    %465 = vmatpush.msra.mxu0 0.0
    %466 = vmatpush.msra.mxu0 0.0
    %467 = vmatpush.msra.mxu0 0.0
    %468 = vmatpush.msra.mxu0 0.0
    %469 = vmatpush.msra.mxu0 %v415
    %470 = vmatpush.msra.mxu0 %v414
    %471 = vmatpush.msra.mxu0 %v413
    %472 = vmatpush.msra.mxu0 %v412
    %473 = vmatmul.f32.gmra.mxu0 %v446
    %v474 = vpop.f32.mrf.mxu0
    %v475 = vadd.f32 0.0, %v474
    %476 = vmatmul.f32.gmra.mxu0 %v449
    %v477 = vpop.f32.mrf.mxu0
    %v478 = vadd.f32 0.0, %v477
    %479 = vmatmul.f32.gmra.mxu0 %v452
    %v480 = vpop.f32.mrf.mxu0
    %v481 = vadd.f32 0.0, %v480
    %482 = vmatmul.f32.gmra.mxu0 %v455
    %v483 = vpop.f32.mrf.mxu0
    %v484 = vadd.f32 0.0, %v483
    %485 = vdwg.mxu0
    %v487 = vsel %vm296, %v98, 0
    %v490 = vsel %vm296, %v99, 0
    %v493 = vsel %vm296, %v100, 0
    %v496 = vsel %vm296, %v101, 0
    %498 = vmatpush.msra.mxu0 0.0
    %499 = vmatpush.msra.mxu0 0.0
    %500 = vmatpush.msra.mxu0 0.0
    %501 = vmatpush.msra.mxu0 0.0
    %502 = vmatpush.msra.mxu0 0.0
    %503 = vmatpush.msra.mxu0 0.0
    %504 = vmatpush.msra.mxu0 0.0
    %505 = vmatpush.msra.mxu0 0.0
    %506 = vmatpush.msra.mxu0 0.0
    %507 = vmatpush.msra.mxu0 0.0
    %508 = vmatpush.msra.mxu0 0.0
    %509 = vmatpush.msra.mxu0 0.0
    %510 = vmatpush.msra.mxu0 %v443
    %511 = vmatpush.msra.mxu0 %v440
    %512 = vmatpush.msra.mxu0 %v437
    %513 = vmatpush.msra.mxu0 %v434
    %514 = vmatmul.f32.gmra.mxu0 %v487
    %v515 = vpop.f32.mrf.mxu0
    %v516 = vadd.f32 %v475, %v515
    %517 = vmatmul.f32.gmra.mxu0 %v490
    %v518 = vpop.f32.mrf.mxu0
    %v519 = vadd.f32 %v478, %v518
    %520 = vmatmul.f32.gmra.mxu0 %v493
    %v521 = vpop.f32.mrf.mxu0
    %v522 = vadd.f32 %v481, %v521
    %523 = vmatmul.f32.gmra.mxu0 %v496
    %v524 = vpop.f32.mrf.mxu0
    %v525 = vadd.f32 %v484, %v524
    %526 = vdwg.mxu0
    %528 = vset.pattern.permute.xlu0 0
    %529 = vperm.xlu0 %528, %v106
    %v530 = vpop.permute.xlu0 %529
    %533 = vset.pattern.permute.xlu0 0
    %534 = vperm.xlu0 %533, %v107
    %v535 = vpop.permute.xlu0 %534
    %538 = vset.pattern.permute.xlu0 0
    %539 = vperm.xlu0 %538, %v108
    %v540 = vpop.permute.xlu0 %539
    %543 = vset.pattern.permute.xlu0 0
    %544 = vperm.xlu0 %543, %v109
    %v545 = vpop.permute.xlu0 %544
    %v547 = vadd.f32 %v516, %v530
    %v548 = vadd.f32 %v519, %v535
    %v549 = vadd.f32 %v522, %v540
    %v550 = vadd.f32 %v525, %v545
    %vm551 = vcmp.gt.f32.partialorder %v547, 0.0
    %vm552 = vcmp.gt.f32.partialorder %v548, 0.0
    %vm553 = vcmp.gt.f32.partialorder %v549, 0.0
    %vm554 = vcmp.gt.f32.partialorder %v550, 0.0
    %v555 = vstv %s73
    %v556 = vmul.f32 %v555, %v547
    %v557 = vmul.f32 %v555, %v548
    %v558 = vmul.f32 %v555, %v549
    %v559 = vmul.f32 %v555, %v550
    %v560 = vsel %vm551, %v547, %v556
    %v561 = vsel %vm552, %v548, %v557
    %v562 = vsel %vm553, %v549, %v558
    %v563 = vsel %vm554, %v550, %v559
    %564 = vst [vmem:[#allocation7] sm:$0xff] %v560
    %565 = vst [vmem:[#allocation7 + $0x8] sm:$0xff] %v561
    %566 = vst [vmem:[#allocation7 + $0x10] sm:$0xff] %v562
    %567 = vst [vmem:[#allocation7 + $0x18] sm:$0xff] %v563
    %s568 = scalar_lea.vmem [#allocation2], 128
    %v569 = vld [vmem:[%s568] sm:$0xff]
    %v570 = vld [vmem:[%s568 + $0x8] sm:$0xff]
    %v571 = vld [vmem:[%s568 + $0x10] sm:$0xff]
    %v572 = vld [vmem:[%s568 + $0x18] sm:$0xff]
    %v573 = vld [vmem:[%s568 + $0x20] sm:$0xff]
    %v574 = vld [vmem:[%s568 + $0x28] sm:$0xff]
    %v575 = vld [vmem:[%s568 + $0x30] sm:$0xff]
    %v576 = vld [vmem:[%s568 + $0x38] sm:$0xff]
    %v577 = vld [vmem:[%s568 + $0x40] sm:$0xff]
    %v578 = vld [vmem:[%s568 + $0x48] sm:$0xff]
    %v579 = vld [vmem:[%s568 + $0x50] sm:$0xff]
    %v580 = vld [vmem:[%s568 + $0x58] sm:$0xff]
    %v581 = vld [vmem:[%s568 + $0x60] sm:$0xff]
    %v582 = vld [vmem:[%s568 + $0x68] sm:$0xff]
    %v583 = vld [vmem:[%s568 + $0x70] sm:$0xff]
    %v584 = vld [vmem:[%s568 + $0x78] sm:$0xff]
    %s585 = scalar_lea.vmem %s0, 8
    %v586 = vld [vmem:[%s585] sm:$0xff]
    %587 = vmatpush.msra.mxu0 %v584
    %588 = vmatpush.msra.mxu0 %v583
    %589 = vmatpush.msra.mxu0 %v582
    %590 = vmatpush.msra.mxu0 %v581
    %591 = vmatpush.msra.mxu0 %v580
    %592 = vmatpush.msra.mxu0 %v579
    %593 = vmatpush.msra.mxu0 %v578
    %594 = vmatpush.msra.mxu0 %v577
    %595 = vmatpush.msra.mxu0 %v576
    %596 = vmatpush.msra.mxu0 %v575
    %597 = vmatpush.msra.mxu0 %v574
    %598 = vmatpush.msra.mxu0 %v573
    %599 = vmatpush.msra.mxu0 %v572
    %600 = vmatpush.msra.mxu0 %v571
    %601 = vmatpush.msra.mxu0 %v570
    %602 = vmatpush.msra.mxu0 %v569
    %603 = vmatmul.f32.gmra.mxu0 %v586
    %v604 = vpop.f32.mrf.mxu0
    %v605 = vadd.f32 0.0, %v604
    %606 = vdwg.mxu0
    %607 = vmatpush.msra.mxu0 0.0
    %608 = vmatpush.msra.mxu0 0.0
    %609 = vmatpush.msra.mxu0 0.0
    %610 = vmatpush.msra.mxu0 0.0
    %611 = vmatpush.msra.mxu0 0.0
    %612 = vmatpush.msra.mxu0 0.0
    %613 = vmatpush.msra.mxu0 0.0
    %614 = vmatpush.msra.mxu0 0.0
    %615 = vmatpush.msra.mxu0 0.0
    %616 = vmatpush.msra.mxu0 0.0
    %617 = vmatpush.msra.mxu0 0.0
    %618 = vmatpush.msra.mxu0 0.0
    %619 = vmatpush.msra.mxu0 0.0
    %620 = vmatpush.msra.mxu0 0.0
    %621 = vmatpush.msra.mxu0 0.0
    %622 = vmatpush.msra.mxu0 %v586
    %623 = vmatmul.f32.gmra.mxu0 %v149
    %v624 = vpop.f32.mrf.mxu0
    %v625 = vadd.f32 0.0, %v624
    %626 = vmatmul.f32.gmra.mxu0 %v152
    %v627 = vpop.f32.mrf.mxu0
    %v628 = vadd.f32 0.0, %v627
    %629 = vmatmul.f32.gmra.mxu0 %v155
    %v630 = vpop.f32.mrf.mxu0
    %v631 = vadd.f32 0.0, %v630
    %632 = vmatmul.f32.gmra.mxu0 %v158
    %v633 = vpop.f32.mrf.mxu0
    %v634 = vadd.f32 0.0, %v633
    %635 = vdwg.mxu0
    %636 = vmatpush.msra.mxu0 0.0
    %637 = vmatpush.msra.mxu0 0.0
    %638 = vmatpush.msra.mxu0 0.0
    %639 = vmatpush.msra.mxu0 0.0
    %640 = vmatpush.msra.mxu0 0.0
    %641 = vmatpush.msra.mxu0 0.0
    %642 = vmatpush.msra.mxu0 0.0
    %643 = vmatpush.msra.mxu0 0.0
    %644 = vmatpush.msra.mxu0 0.0
    %645 = vmatpush.msra.mxu0 0.0
    %646 = vmatpush.msra.mxu0 0.0
    %647 = vmatpush.msra.mxu0 0.0
    %648 = vmatpush.msra.mxu0 0.0
    %649 = vmatpush.msra.mxu0 0.0
    %650 = vmatpush.msra.mxu0 0.0
    %651 = vmatpush.msra.mxu0 %v605
    %652 = vmatmul.f32.gmra.mxu0 %v190
    %v653 = vpop.f32.mrf.mxu0
    %v654 = vadd.f32 %v625, %v653
    %655 = vmatmul.f32.gmra.mxu0 %v193
    %v656 = vpop.f32.mrf.mxu0
    %v657 = vadd.f32 %v628, %v656
    %658 = vmatmul.f32.gmra.mxu0 %v196
    %v659 = vpop.f32.mrf.mxu0
    %v660 = vadd.f32 %v631, %v659
    %661 = vmatmul.f32.gmra.mxu0 %v199
    %v662 = vpop.f32.mrf.mxu0
    %v663 = vadd.f32 %v634, %v662
    %664 = vdwg.mxu0
    %v665 = vadd.f32 %v654, %v233
    %v666 = vadd.f32 %v657, %v238
    %v667 = vadd.f32 %v660, %v243
    %v668 = vadd.f32 %v663, %v248
    %vm669 = vcmp.gt.f32.partialorder %v665, 0.0
    %vm670 = vcmp.gt.f32.partialorder %v666, 0.0
    %vm671 = vcmp.gt.f32.partialorder %v667, 0.0
    %vm672 = vcmp.gt.f32.partialorder %v668, 0.0
    %v673 = vmul.f32 %v258, %v665
    %v674 = vmul.f32 %v258, %v666
    %v675 = vmul.f32 %v258, %v667
    %v676 = vmul.f32 %v258, %v668
    %v677 = vsel %vm669, %v665, %v673
    %v678 = vsel %vm670, %v666, %v674
    %v679 = vsel %vm671, %v667, %v675
    %v680 = vsel %vm672, %v668, %v676
    %681 = vmatpush.msra.mxu0 %v584
    %682 = vmatpush.msra.mxu0 %v583
    %683 = vmatpush.msra.mxu0 %v582
    %684 = vmatpush.msra.mxu0 %v581
    %685 = vmatpush.msra.mxu0 %v580
    %686 = vmatpush.msra.mxu0 %v579
    %687 = vmatpush.msra.mxu0 %v578
    %688 = vmatpush.msra.mxu0 %v577
    %689 = vmatpush.msra.mxu0 %v576
    %690 = vmatpush.msra.mxu0 %v575
    %691 = vmatpush.msra.mxu0 %v574
    %692 = vmatpush.msra.mxu0 %v573
    %693 = vmatpush.msra.mxu0 %v572
    %694 = vmatpush.msra.mxu0 %v571
    %695 = vmatpush.msra.mxu0 %v570
    %696 = vmatpush.msra.mxu0 %v569
    %697 = vmatmul.f32.gmra.mxu0 %v677
    %v698 = vpop.f32.mrf.mxu0
    %v699 = vadd.f32 0.0, %v698
    %700 = vmatmul.f32.gmra.mxu0 %v678
    %v701 = vpop.f32.mrf.mxu0
    %v702 = vadd.f32 0.0, %v701
    %703 = vmatmul.f32.gmra.mxu0 %v679
    %v704 = vpop.f32.mrf.mxu0
    %v705 = vadd.f32 0.0, %v704
    %706 = vmatmul.f32.gmra.mxu0 %v680
    %v707 = vpop.f32.mrf.mxu0
    %v708 = vadd.f32 0.0, %v707
    %709 = vdwg.mxu0
    %710 = vmatpush.msra.mxu0 0.0
    %711 = vmatpush.msra.mxu0 0.0
    %712 = vmatpush.msra.mxu0 0.0
    %713 = vmatpush.msra.mxu0 0.0
    %714 = vmatpush.msra.mxu0 0.0
    %715 = vmatpush.msra.mxu0 0.0
    %716 = vmatpush.msra.mxu0 0.0
    %717 = vmatpush.msra.mxu0 0.0
    %718 = vmatpush.msra.mxu0 0.0
    %719 = vmatpush.msra.mxu0 0.0
    %720 = vmatpush.msra.mxu0 0.0
    %721 = vmatpush.msra.mxu0 0.0
    %722 = vmatpush.msra.mxu0 %v680
    %723 = vmatpush.msra.mxu0 %v679
    %724 = vmatpush.msra.mxu0 %v678
    %725 = vmatpush.msra.mxu0 %v677
    %726 = vmatmul.f32.gmra.mxu0 %v298
    %v727 = vpop.f32.mrf.mxu0
    %v728 = vadd.f32 0.0, %v727
    %729 = vmatmul.f32.gmra.mxu0 %v301
    %v730 = vpop.f32.mrf.mxu0
    %v731 = vadd.f32 0.0, %v730
    %732 = vmatmul.f32.gmra.mxu0 %v304
    %v733 = vpop.f32.mrf.mxu0
    %v734 = vadd.f32 0.0, %v733
    %735 = vmatmul.f32.gmra.mxu0 %v307
    %v736 = vpop.f32.mrf.mxu0
    %v737 = vadd.f32 0.0, %v736
    %738 = vdwg.mxu0
    %739 = vmatpush.msra.mxu0 0.0
    %740 = vmatpush.msra.mxu0 0.0
    %741 = vmatpush.msra.mxu0 0.0
    %742 = vmatpush.msra.mxu0 0.0
    %743 = vmatpush.msra.mxu0 0.0
    %744 = vmatpush.msra.mxu0 0.0
    %745 = vmatpush.msra.mxu0 0.0
    %746 = vmatpush.msra.mxu0 0.0
    %747 = vmatpush.msra.mxu0 0.0
    %748 = vmatpush.msra.mxu0 0.0
    %749 = vmatpush.msra.mxu0 0.0
    %750 = vmatpush.msra.mxu0 0.0
    %751 = vmatpush.msra.mxu0 %v708
    %752 = vmatpush.msra.mxu0 %v705
    %753 = vmatpush.msra.mxu0 %v702
    %754 = vmatpush.msra.mxu0 %v699
    %755 = vmatmul.f32.gmra.mxu0 %v339
    %v756 = vpop.f32.mrf.mxu0
    %v757 = vadd.f32 %v728, %v756
    %758 = vmatmul.f32.gmra.mxu0 %v342
    %v759 = vpop.f32.mrf.mxu0
    %v760 = vadd.f32 %v731, %v759
    %761 = vmatmul.f32.gmra.mxu0 %v345
    %v762 = vpop.f32.mrf.mxu0
    %v763 = vadd.f32 %v734, %v762
    %764 = vmatmul.f32.gmra.mxu0 %v348
    %v765 = vpop.f32.mrf.mxu0
    %v766 = vadd.f32 %v737, %v765
    %767 = vdwg.mxu0
    %v768 = vadd.f32 %v757, %v382
    %v769 = vadd.f32 %v760, %v387
    %v770 = vadd.f32 %v763, %v392
    %v771 = vadd.f32 %v766, %v397
    %vm772 = vcmp.gt.f32.partialorder %v768, 0.0
    %vm773 = vcmp.gt.f32.partialorder %v769, 0.0
    %vm774 = vcmp.gt.f32.partialorder %v770, 0.0
    %vm775 = vcmp.gt.f32.partialorder %v771, 0.0
    %v776 = vmul.f32 %v407, %v768
    %v777 = vmul.f32 %v407, %v769
    %v778 = vmul.f32 %v407, %v770
    %v779 = vmul.f32 %v407, %v771
    %v780 = vsel %vm772, %v768, %v776
    %v781 = vsel %vm773, %v769, %v777
    %v782 = vsel %vm774, %v770, %v778
    %v783 = vsel %vm775, %v771, %v779
    %784 = vmatpush.msra.mxu0 %v584
    %785 = vmatpush.msra.mxu0 %v583
    %786 = vmatpush.msra.mxu0 %v582
    %787 = vmatpush.msra.mxu0 %v581
    %788 = vmatpush.msra.mxu0 %v580
    %789 = vmatpush.msra.mxu0 %v579
    %790 = vmatpush.msra.mxu0 %v578
    %791 = vmatpush.msra.mxu0 %v577
    %792 = vmatpush.msra.mxu0 %v576
    %793 = vmatpush.msra.mxu0 %v575
    %794 = vmatpush.msra.mxu0 %v574
    %795 = vmatpush.msra.mxu0 %v573
    %796 = vmatpush.msra.mxu0 %v572
    %797 = vmatpush.msra.mxu0 %v571
    %798 = vmatpush.msra.mxu0 %v570
    %799 = vmatpush.msra.mxu0 %v569
    %800 = vmatmul.f32.gmra.mxu0 %v780
    %v801 = vpop.f32.mrf.mxu0
    %v802 = vadd.f32 0.0, %v801
    %803 = vmatmul.f32.gmra.mxu0 %v781
    %v804 = vpop.f32.mrf.mxu0
    %v805 = vadd.f32 0.0, %v804
    %806 = vmatmul.f32.gmra.mxu0 %v782
    %v807 = vpop.f32.mrf.mxu0
    %v808 = vadd.f32 0.0, %v807
    %809 = vmatmul.f32.gmra.mxu0 %v783
    %v810 = vpop.f32.mrf.mxu0
    %v811 = vadd.f32 0.0, %v810
    %812 = vdwg.mxu0
    %813 = vmatpush.msra.mxu0 0.0
    %814 = vmatpush.msra.mxu0 0.0
    %815 = vmatpush.msra.mxu0 0.0
    %816 = vmatpush.msra.mxu0 0.0
    %817 = vmatpush.msra.mxu0 0.0
    %818 = vmatpush.msra.mxu0 0.0
    %819 = vmatpush.msra.mxu0 0.0
    %820 = vmatpush.msra.mxu0 0.0
    %821 = vmatpush.msra.mxu0 0.0
    %822 = vmatpush.msra.mxu0 0.0
    %823 = vmatpush.msra.mxu0 0.0
    %824 = vmatpush.msra.mxu0 0.0
    %825 = vmatpush.msra.mxu0 %v783
    %826 = vmatpush.msra.mxu0 %v782
    %827 = vmatpush.msra.mxu0 %v781
    %828 = vmatpush.msra.mxu0 %v780
    %829 = vmatmul.f32.gmra.mxu0 %v446
    %v830 = vpop.f32.mrf.mxu0
    %v831 = vadd.f32 0.0, %v830
    %832 = vmatmul.f32.gmra.mxu0 %v449
    %v833 = vpop.f32.mrf.mxu0
    %v834 = vadd.f32 0.0, %v833
    %835 = vmatmul.f32.gmra.mxu0 %v452
    %v836 = vpop.f32.mrf.mxu0
    %v837 = vadd.f32 0.0, %v836
    %838 = vmatmul.f32.gmra.mxu0 %v455
    %v839 = vpop.f32.mrf.mxu0
    %v840 = vadd.f32 0.0, %v839
    %841 = vdwg.mxu0
    %842 = vmatpush.msra.mxu0 0.0
    %843 = vmatpush.msra.mxu0 0.0
    %844 = vmatpush.msra.mxu0 0.0
    %845 = vmatpush.msra.mxu0 0.0
    %846 = vmatpush.msra.mxu0 0.0
    %847 = vmatpush.msra.mxu0 0.0
    %848 = vmatpush.msra.mxu0 0.0
    %849 = vmatpush.msra.mxu0 0.0
    %850 = vmatpush.msra.mxu0 0.0
    %851 = vmatpush.msra.mxu0 0.0
    %852 = vmatpush.msra.mxu0 0.0
    %853 = vmatpush.msra.mxu0 0.0
    %854 = vmatpush.msra.mxu0 %v811
    %855 = vmatpush.msra.mxu0 %v808
    %856 = vmatpush.msra.mxu0 %v805
    %857 = vmatpush.msra.mxu0 %v802
    %858 = vmatmul.f32.gmra.mxu0 %v487
    %v859 = vpop.f32.mrf.mxu0
    %v860 = vadd.f32 %v831, %v859
    %861 = vmatmul.f32.gmra.mxu0 %v490
    %v862 = vpop.f32.mrf.mxu0
    %v863 = vadd.f32 %v834, %v862
    %864 = vmatmul.f32.gmra.mxu0 %v493
    %v865 = vpop.f32.mrf.mxu0
    %v866 = vadd.f32 %v837, %v865
    %867 = vmatmul.f32.gmra.mxu0 %v496
    %v868 = vpop.f32.mrf.mxu0
    %v869 = vadd.f32 %v840, %v868
    %870 = vdwg.mxu0
    %v871 = vadd.f32 %v860, %v530
    %v872 = vadd.f32 %v863, %v535
    %v873 = vadd.f32 %v866, %v540
    %v874 = vadd.f32 %v869, %v545
    %vm875 = vcmp.gt.f32.partialorder %v871, 0.0
    %vm876 = vcmp.gt.f32.partialorder %v872, 0.0
    %vm877 = vcmp.gt.f32.partialorder %v873, 0.0
    %vm878 = vcmp.gt.f32.partialorder %v874, 0.0
    %v879 = vmul.f32 %v555, %v871
    %v880 = vmul.f32 %v555, %v872
    %v881 = vmul.f32 %v555, %v873
    %v882 = vmul.f32 %v555, %v874
    %v883 = vsel %vm875, %v871, %v879
    %v884 = vsel %vm876, %v872, %v880
    %v885 = vsel %vm877, %v873, %v881
    %v886 = vsel %vm878, %v874, %v882
    %s887 = scalar_lea.vmem [#allocation7], 32
    %888 = vst [vmem:[%s887] sm:$0xff] %v883
    %889 = vst [vmem:[%s887 + $0x8] sm:$0xff] %v884
    %890 = vst [vmem:[%s887 + $0x10] sm:$0xff] %v885
    %891 = vst [vmem:[%s887 + $0x18] sm:$0xff] %v886
    // Predicated region
    $region58: #{tpu_custom_call.1} parent=1 // pred_check
      _
    $region59: #{tpu_custom_call.1} parent=1 // pred_check_branch
      %893 = sbr.rel (0) target = $region61
    $region60: #{tpu_custom_call.1} parent=1 // pred_region
      %895 = vsyncadd [#allocation4], 0
      %s896 = sshll.u32 [#allocation7], 4
      %s897 = int_to_ptr.vmem [resolvable:$true] %s896
      %s898 = sshll.u32 %s12, 4
      %s899 = int_to_ptr.hbm [resolvable:$true] %s898
      %904 = dma.vmem_to_hbm [thread:$0]  %s897, 1024, %s899, [#allocation4], 128, 128, 8
    $region61: #{tpu_custom_call.1} parent=1 // pred_fallthru
      _
    // Predicated region
    $region62: #{tpu_custom_call.1} parent=1 // pred_check
      _
    $region63: #{tpu_custom_call.1} parent=1 // pred_check_branch
      %906 = sbr.rel (0) target = $region65
    $region64: #{tpu_custom_call.1} parent=1 // pred_region
      %908 = dma.done [#allocation4], 1024
    $region65: #{tpu_custom_call.1} parent=1 // pred_fallthru
      _
    %909 = vsyncpa [#allocation3], 1
    %910 = vsyncpa [#allocation4], 1
    %911 = vsyncpa [#allocation5], 1

</llo_original>
